<compile_context>
chip_gen: v5e
topology: v5e:2x2
jax: 0.10.0
libtpu: 0.0.40
codegen_flags: <defaults>
</compile_context>

<pallas_src>
import functools

import jax
import jax.numpy as jnp
from jax.experimental import pallas as pl
from jax.experimental.pallas import tpu as pltpu


def _round_up(x, m):
    return (x + m - 1) // m * m


def _actor_kernel(s_ref, w1_ref, b1_ref, w2_ref, b2_ref, w3_ref, b3_ref,
                  out_ref, *, max_action):
    """Fused 3-layer MLP on one batch tile.

    Matmuls hit the MXU (bf16 inputs, f32 accumulation); bias/relu/tanh run on
    the VPU/EUP in f32. Weights are VMEM-resident across all grid steps.
    """
    x = s_ref[...]                                                    # (TB, S)
    h1 = jnp.dot(x, w1_ref[...], preferred_element_type=jnp.float32)
    h1 = jnp.maximum(h1 + b1_ref[...], 0.0).astype(w2_ref.dtype)      # (TB, 128)
    h2 = jnp.dot(h1, w2_ref[...], preferred_element_type=jnp.float32)
    h2 = jnp.maximum(h2 + b2_ref[...], 0.0).astype(w3_ref.dtype)      # (TB, 256)
    y = jnp.dot(h2, w3_ref[...], preferred_element_type=jnp.float32) + b3_ref[...]
    out_ref[...] = (max_action * jnp.tanh(y)).astype(out_ref.dtype)   # (TB, 128)


def actor_forward(state, params, max_action, *, block_batch=256,
                  compute_dtype=jnp.bfloat16):
    """Fused Actor forward pass.

    state:  (B, state_dim) float32
    params: dict with w1 (state_dim,128), b1 (1,128), w2 (128,256), b2 (1,256),
            w3 (256,action_dim), b3 (1,action_dim)   (weights pre-transposed).
    """
    B, S = state.shape
    action_dim = params["w3"].shape[1]
    N_out = _round_up(action_dim, 128)            # lane-dense output slab width

    # Batch tiling: TB multiple of 8, B padded up to a multiple of TB.
    TB = min(block_batch, _round_up(B, 8))
    B_pad = _round_up(B, TB)
    grid = (B_pad // TB,)

    cd = jnp.dtype(compute_dtype)
    itemsize = cd.itemsize

    # Weights in the MXU compute dtype (bf16 halves VMEM/HBM traffic);
    # biases stay f32 (added to the f32 accumulators).
    w1 = params["w1"].astype(cd)
    w2 = params["w2"].astype(cd)
    w3 = jnp.zeros((params["w3"].shape[0], N_out), cd)
    w3 = w3.at[:, :action_dim].set(params["w3"].astype(cd))
    b1 = params["b1"].astype(jnp.float32)
    b2 = params["b2"].astype(jnp.float32)
    b3 = jnp.zeros((1, N_out), jnp.float32)
    b3 = b3.at[:, :action_dim].set(params["b3"].astype(jnp.float32))

    x = state.astype(cd)
    if B_pad != B:
        x = jnp.pad(x, ((0, B_pad - B), (0, 0)))

    def resident_spec(arr):
        # Whole-array block with constant index map -> stays in VMEM across
        # every grid step (weights/biases).
        return pl.BlockSpec(arr.shape, lambda i: (0, 0))

    kernel = functools.partial(_actor_kernel, max_action=float(max_action))

    # VMEM budget: resident weights + double-buffered state/out tiles + f32
    # activation temporaries, with 2x headroom (clamped to 64 MiB for v7x).
    resident_bytes = ((w1.size + w2.size + w3.size) * itemsize
                      + (b1.size + b2.size + b3.size) * 4)
    per_step_bytes = (2 * (TB * S * itemsize + TB * N_out * 4)
                      + TB * (128 + 256 + N_out) * 4)
    vmem_limit = int(min(64 << 20, max(8 << 20,
                                       2 * (resident_bytes + per_step_bytes))))

    cost = pl.CostEstimate(
        flops=2 * B_pad * (S * 128 + 128 * 256 + 256 * N_out),
        transcendentals=B_pad * N_out,
        bytes_accessed=int(resident_bytes
                           + B_pad * S * itemsize + B_pad * N_out * 4),
    )

    out = pl.pallas_call(
        kernel,
        out_shape=jax.ShapeDtypeStruct((B_pad, N_out), jnp.float32),
        grid=grid,
        in_specs=[
            pl.BlockSpec((TB, S), lambda i: (i, 0)),   # state tile, pipelined
            resident_spec(w1), resident_spec(b1),
            resident_spec(w2), resident_spec(b2),
            resident_spec(w3), resident_spec(b3),
        ],
        out_specs=pl.BlockSpec((TB, N_out), lambda i: (i, 0)),
        compiler_params=pltpu.CompilerParams(
            dimension_semantics=("parallel",),
            vmem_limit_bytes=vmem_limit),
        cost_estimate=cost,
    )(x, w1, b1, w2, b2, w3, b3)

    return out[:B, :action_dim]


def init_actor_params(key, state_dim, action_dim):
    """Deterministic synthetic parameters matching nn.Linear shapes
    (weights stored pre-transposed to (in, out))."""
    ks = jax.random.split(key, 6)

    def uinit(k, shape, fan_in):
        bound = 1.0 / jnp.sqrt(fan_in)
        return jax.random.uniform(k, shape, jnp.float32, -bound, bound)

    return {
        "w1": uinit(ks[0], (state_dim, 128), state_dim),
        "b1": uinit(ks[1], (1, 128), state_dim),
        "w2": uinit(ks[2], (128, 256), 128),
        "b2": uinit(ks[3], (1, 256), 128),
        "w3": uinit(ks[4], (256, action_dim), 256),
        "b3": uinit(ks[5], (1, action_dim), 256),
    }


def actor_forward_ref(state, params, max_action, compute_dtype=jnp.bfloat16):
    """Pure-JAX reference mirroring the kernel's mixed-precision scheme."""
    cd = jnp.dtype(compute_dtype)
    x = state.astype(cd)
    h1 = jnp.dot(x, params["w1"].astype(cd),
                 preferred_element_type=jnp.float32) + params["b1"]
    h1 = jnp.maximum(h1, 0.0).astype(cd)
    h2 = jnp.dot(h1, params["w2"].astype(cd),
                 preferred_element_type=jnp.float32) + params["b2"]
    h2 = jnp.maximum(h2, 0.0).astype(cd)
    y = jnp.dot(h2, params["w3"].astype(cd),
                preferred_element_type=jnp.float32) + params["b3"]
    return max_action * jnp.tanh(y)


def actor_forward_ref_f32(state, params, max_action):
    """Full-f32 reference (matches the original PyTorch math)."""
    x = jnp.maximum(state @ params["w1"] + params["b1"], 0.0)
    x = jnp.maximum(x @ params["w2"] + params["b2"], 0.0)
    x = x @ params["w3"] + params["b3"]
    return max_action * jnp.tanh(x)


if __name__ == "__main__":
    key = jax.random.PRNGKey(0)
    k_param, k_state, k_state2 = jax.random.split(key, 3)

    batch = 8
    state_dim = 16
    action_dim = 4
    max_action = 2.0

    params = init_actor_params(k_param, state_dim, action_dim)
    state = jax.random.normal(k_state, (batch, state_dim), dtype=jnp.float32)

    out = actor_forward(state, params, max_action)
    out = jax.block_until_ready(out)
    assert out.shape == (batch, action_dim)

    ref = actor_forward_ref(state, params, max_action)
    assert jnp.allclose(out, ref, atol=1e-3, rtol=1e-3), "mismatch vs bf16 reference"

    ref32 = actor_forward_ref_f32(state, params, max_action)
    assert jnp.allclose(out, ref32, atol=5e-2, rtol=5e-2), "mismatch vs f32 reference"

    # Exercise batch tiling + padding (B not a multiple of the batch tile).
    big_batch = 300
    state2 = jax.random.normal(k_state2, (big_batch, state_dim), dtype=jnp.float32)
    out2 = jax.block_until_ready(
        actor_forward(state2, params, max_action, block_batch=128))
    ref2 = actor_forward_ref(state2, params, max_action)
    assert out2.shape == (big_batch, action_dim)
    assert jnp.allclose(out2, ref2, atol=1e-3, rtol=1e-3), "tiled-batch mismatch"

    print("KERNEL_OK")
</pallas_src>

<mosaic_0001>
module attributes {stable_mosaic.version = 11 : i64} {
  func.func @_actor_kernel(%arg0: i32, %arg1: memref<8x16xbf16, #tpu.memory_space<vmem>>, %arg2: memref<16x128xbf16, #tpu.memory_space<vmem>>, %arg3: memref<1x128xf32, #tpu.memory_space<vmem>>, %arg4: memref<128x256xbf16, #tpu.memory_space<vmem>>, %arg5: memref<1x256xf32, #tpu.memory_space<vmem>>, %arg6: memref<256x128xbf16, #tpu.memory_space<vmem>>, %arg7: memref<1x128xf32, #tpu.memory_space<vmem>>, %arg8: memref<8x128xf32, #tpu.memory_space<vmem>>) attributes {dimension_semantics = [#tpu.dimension_semantics<parallel>], iteration_bounds = array<i64: 1>, scalar_prefetch = 0 : i64, scratch_operands = 0 : i64, tpu.core_type = #tpu.core_type<tc>, window_params = [{transform_indices = @transform_0, window_bounds = array<i64: 8, 16>}, {pipeline_mode = #tpu.pipeline_mode<synchronous>, transform_indices = @transform_1, window_bounds = array<i64: 16, 128>}, {pipeline_mode = #tpu.pipeline_mode<synchronous>, transform_indices = @transform_2, window_bounds = array<i64: 1, 128>}, {pipeline_mode = #tpu.pipeline_mode<synchronous>, transform_indices = @transform_3, window_bounds = array<i64: 128, 256>}, {pipeline_mode = #tpu.pipeline_mode<synchronous>, transform_indices = @transform_4, window_bounds = array<i64: 1, 256>}, {pipeline_mode = #tpu.pipeline_mode<synchronous>, transform_indices = @transform_5, window_bounds = array<i64: 256, 128>}, {pipeline_mode = #tpu.pipeline_mode<synchronous>, transform_indices = @transform_6, window_bounds = array<i64: 1, 128>}, {transform_indices = @transform_7, window_bounds = array<i64: 8, 128>}]} {
    %c0 = arith.constant 0 : index
    %c0_0 = arith.constant 0 : index
    %0 = vector.load %arg1[%c0, %c0_0] : memref<8x16xbf16, #tpu.memory_space<vmem>>, vector<8x16xbf16>
    %c0_1 = arith.constant 0 : index
    %c0_2 = arith.constant 0 : index
    %1 = vector.load %arg2[%c0_1, %c0_2] : memref<16x128xbf16, #tpu.memory_space<vmem>>, vector<16x128xbf16>
    %cst = arith.constant dense<0.000000e+00> : vector<8x128xf32>
    %2 = tpu.matmul %0, %1, %cst {dimension_numbers = #tpu.dot_dimension_numbers<[1], [0], [0], [1], [0, 0, 1, 1], [], []>} : vector<8x16xbf16>, vector<16x128xbf16>, vector<8x128xf32> -> vector<8x128xf32>
    %c0_3 = arith.constant 0 : index
    %c0_4 = arith.constant 0 : index
    %3 = vector.load %arg3[%c0_3, %c0_4] : memref<1x128xf32, #tpu.memory_space<vmem>>, vector<1x128xf32>
    %4 = vector.broadcast %3 : vector<1x128xf32> to vector<8x128xf32>
    %5 = arith.addf %2, %4 : vector<8x128xf32>
    %cst_5 = arith.constant 0.000000e+00 : f32
    %6 = vector.broadcast %cst_5 : f32 to vector<8x128xf32>
    %7 = arith.maximumf %5, %6 : vector<8x128xf32>
    %8 = arith.truncf %7 : vector<8x128xf32> to vector<8x128xbf16>
    %c0_6 = arith.constant 0 : index
    %c0_7 = arith.constant 0 : index
    %9 = vector.load %arg4[%c0_6, %c0_7] : memref<128x256xbf16, #tpu.memory_space<vmem>>, vector<128x256xbf16>
    %cst_8 = arith.constant dense<0.000000e+00> : vector<8x256xf32>
    %10 = tpu.matmul %8, %9, %cst_8 {dimension_numbers = #tpu.dot_dimension_numbers<[1], [0], [0], [1], [0, 0, 1, 1], [], []>} : vector<8x128xbf16>, vector<128x256xbf16>, vector<8x256xf32> -> vector<8x256xf32>
    %c0_9 = arith.constant 0 : index
    %c0_10 = arith.constant 0 : index
    %11 = vector.load %arg5[%c0_9, %c0_10] : memref<1x256xf32, #tpu.memory_space<vmem>>, vector<1x256xf32>
    %12 = vector.broadcast %11 : vector<1x256xf32> to vector<8x256xf32>
    %13 = arith.addf %10, %12 : vector<8x256xf32>
    %cst_11 = arith.constant 0.000000e+00 : f32
    %14 = vector.broadcast %cst_11 : f32 to vector<8x256xf32>
    %15 = arith.maximumf %13, %14 : vector<8x256xf32>
    %16 = arith.truncf %15 : vector<8x256xf32> to vector<8x256xbf16>
    %c0_12 = arith.constant 0 : index
    %c0_13 = arith.constant 0 : index
    %17 = vector.load %arg6[%c0_12, %c0_13] : memref<256x128xbf16, #tpu.memory_space<vmem>>, vector<256x128xbf16>
    %cst_14 = arith.constant dense<0.000000e+00> : vector<8x128xf32>
    %18 = tpu.matmul %16, %17, %cst_14 {dimension_numbers = #tpu.dot_dimension_numbers<[1], [0], [0], [1], [0, 0, 1, 1], [], []>} : vector<8x256xbf16>, vector<256x128xbf16>, vector<8x128xf32> -> vector<8x128xf32>
    %c0_15 = arith.constant 0 : index
    %c0_16 = arith.constant 0 : index
    %19 = vector.load %arg7[%c0_15, %c0_16] : memref<1x128xf32, #tpu.memory_space<vmem>>, vector<1x128xf32>
    %20 = vector.broadcast %19 : vector<1x128xf32> to vector<8x128xf32>
    %21 = arith.addf %18, %20 : vector<8x128xf32>
    %22 = math.tanh %21 : vector<8x128xf32>
    %cst_17 = arith.constant 2.000000e+00 : f32
    %23 = vector.broadcast %cst_17 : f32 to vector<8x128xf32>
    %24 = arith.mulf %23, %22 : vector<8x128xf32>
    %c0_18 = arith.constant 0 : index
    %c0_19 = arith.constant 0 : index
    %25 = vector.load %arg8[%c0_18, %c0_19] : memref<8x128xf32, #tpu.memory_space<vmem>>, vector<8x128xf32>
    tpu.vector_store %arg8[%c0_18, %c0_19], %24 {strides = array<i32>} : memref<8x128xf32, #tpu.memory_space<vmem>>, vector<8x128xf32>,
    return
  }
  func.func @transform_0(%arg0: i32) -> (i32, i32) {
    %c0_i32 = arith.constant 0 : i32
    %c0_i32_0 = arith.constant 0 : i32
    return %arg0, %c0_i32 : i32, i32
  }
  func.func @transform_1(%arg0: i32) -> (i32, i32) {
    %c0_i32 = arith.constant 0 : i32
    %c0_i32_0 = arith.constant 0 : i32
    %c0_i32_1 = arith.constant 0 : i32
    return %c0_i32, %c0_i32_0 : i32, i32
  }
  func.func @transform_2(%arg0: i32) -> (i32, i32) {
    %c0_i32 = arith.constant 0 : i32
    %c0_i32_0 = arith.constant 0 : i32
    %c0_i32_1 = arith.constant 0 : i32
    return %c0_i32, %c0_i32_0 : i32, i32
  }
  func.func @transform_3(%arg0: i32) -> (i32, i32) {
    %c0_i32 = arith.constant 0 : i32
    %c0_i32_0 = arith.constant 0 : i32
    %c0_i32_1 = arith.constant 0 : i32
    return %c0_i32, %c0_i32_0 : i32, i32
  }
  func.func @transform_4(%arg0: i32) -> (i32, i32) {
    %c0_i32 = arith.constant 0 : i32
    %c0_i32_0 = arith.constant 0 : i32
    %c0_i32_1 = arith.constant 0 : i32
    return %c0_i32, %c0_i32_0 : i32, i32
  }
  func.func @transform_5(%arg0: i32) -> (i32, i32) {
    %c0_i32 = arith.constant 0 : i32
    %c0_i32_0 = arith.constant 0 : i32
    %c0_i32_1 = arith.constant 0 : i32
    return %c0_i32, %c0_i32_0 : i32, i32
  }
  func.func @transform_6(%arg0: i32) -> (i32, i32) {
    %c0_i32 = arith.constant 0 : i32
    %c0_i32_0 = arith.constant 0 : i32
    %c0_i32_1 = arith.constant 0 : i32
    return %c0_i32, %c0_i32_0 : i32, i32
  }
  func.func @transform_7(%arg0: i32) -> (i32, i32) {
    %c0_i32 = arith.constant 0 : i32
    %c0_i32_0 = arith.constant 0 : i32
    return %arg0, %c0_i32 : i32, i32
  }
}

</mosaic_0001>

<llo_original>
// kernel: tpu_custom_call.1
$region0: #{tpu_custom_call.1}
  #allocation0 [shape = 'u32[]', space=smem, size = 0x4, offset = 0x4, fixed_abs, tag = 'smem constant byte address 0x4 - core index']
  #allocation1 [shape = 'u32[72,128]{1,0:T(1,128)}', space=vmem, size = 0x9000, scoped, tag = 'internal scratch']
  %s0 = inlined_call_operand.hbm [shape: bf16[8,16], index: 0, kind: input, shape index: {}]
  %s1 = inlined_call_operand.hbm [shape: bf16[16,128], index: 1, kind: input, shape index: {}]
  %s2 = inlined_call_operand.vmem [shape: f32[1,128], index: 2, kind: input, shape index: {}]
  %s3 = inlined_call_operand.hbm [shape: bf16[128,256], index: 3, kind: input, shape index: {}]
  %s4 = inlined_call_operand.vmem [shape: f32[1,256], index: 4, kind: input, shape index: {}]
  %s5 = inlined_call_operand.hbm [shape: bf16[256,128], index: 5, kind: input, shape index: {}]
  %s6 = inlined_call_operand.vmem [shape: f32[1,128], index: 6, kind: input, shape index: {}]
  %s7 = inlined_call_operand.hbm [shape: f32[8,128], index: 7, kind: output, shape index: {}]
  %s8 = sld [smem:[#allocation0]]
  $region54: #{tpu_custom_call.1} parent=0
    _
  %s10 = ssub.s32 1, %s8
  %s11 = scalar_select 0, %s10, %s8
  $region1: #{tpu_custom_call.1} parent=0
    #allocation2 [shape = 'u8[2048]{0}', space=vmem, size = 0x800, scoped, tag = 'input window, operand 0, single buffered']
    #allocation3 [shape = 's32[1]{0}', space=sflag, size = 0x4, scoped, tag = 'scoped memory for tpu_custom_call.1']
    #allocation4 [shape = 's32[1]{0}', space=sflag, size = 0x4, scoped, tag = 'scoped memory for tpu_custom_call.1']
    #allocation5 [shape = 'u8[4096]{0}', space=vmem, size = 0x1000, scoped, tag = 'input window, operand 1, single buffered']
    #allocation6 [shape = 's32[1]{0}', space=sflag, size = 0x4, scoped, tag = 'scoped memory for tpu_custom_call.1']
    #allocation7 [shape = 'u8[65536]{0}', space=vmem, size = 0x10000, scoped, tag = 'input window, operand 3, single buffered']
    #allocation8 [shape = 'u8[65536]{0}', space=vmem, size = 0x10000, scoped, tag = 'input window, operand 5, single buffered']
    #allocation9 [shape = 's32[1]{0}', space=sflag, size = 0x4, scoped, tag = 'scoped memory for tpu_custom_call.1']
    #allocation10 [shape = 'u8[4096]{0}', space=vmem, size = 0x1000, scoped, tag = 'output window, operand 0, single buffered']
    %12 = vsyncpa [#allocation3], 0
    %13 = vsyncpa [#allocation6], 0
    %14 = vsyncpa [#allocation9], 0
    %15 = vsyncpa [#allocation4], 0
    // Predicated region
    $region2: #{tpu_custom_call.1} parent=1 // pred_check
      _
    $region3: #{tpu_custom_call.1} parent=1 // pred_check_branch
      %17 = sbr.rel (0) target = $region5
    $region4: #{tpu_custom_call.1} parent=1 // pred_region
      %19 = vsyncadd [#allocation3], 0
      %s21 = sshll.u32 %s0, 4
      %s22 = int_to_ptr.hbm [resolvable:$true] %s21
      %s23 = sshll.u32 [#allocation2], 4
      %s24 = int_to_ptr.vmem [resolvable:$true] %s23
      %26 = dma.hbm_to_vmem [thread:$0]  %s22, 64, %s24, [#allocation3]
    $region5: #{tpu_custom_call.1} parent=1 // pred_fallthru
      _
    // Predicated region
    $region6: #{tpu_custom_call.1} parent=1 // pred_check
      _
    $region7: #{tpu_custom_call.1} parent=1 // pred_check_branch
      %28 = sbr.rel (0) target = $region9
    $region8: #{tpu_custom_call.1} parent=1 // pred_region
      %30 = vsyncadd [#allocation6], 0
      %s31 = sshll.u32 %s1, 4
      %s32 = int_to_ptr.hbm [resolvable:$true] %s31
      %s33 = sshll.u32 [#allocation5], 4
      %s34 = int_to_ptr.vmem [resolvable:$true] %s33
      %39 = dma.hbm_to_vmem [thread:$0]  %s32, 128, %s34, [#allocation6], 64, 64, 4
    $region9: #{tpu_custom_call.1} parent=1 // pred_fallthru
      _
    // Predicated region
    $region10: #{tpu_custom_call.1} parent=1 // pred_check
      _
    $region11: #{tpu_custom_call.1} parent=1 // pred_check_branch
      %41 = sbr.rel (0) target = $region13
    $region12: #{tpu_custom_call.1} parent=1 // pred_region
      _
    $region13: #{tpu_custom_call.1} parent=1 // pred_fallthru
      _
    // Predicated region
    $region14: #{tpu_custom_call.1} parent=1 // pred_check
      _
    $region15: #{tpu_custom_call.1} parent=1 // pred_check_branch
      %43 = sbr.rel (0) target = $region17
    $region16: #{tpu_custom_call.1} parent=1 // pred_region
      %45 = vsyncadd [#allocation6], 0
      %s46 = sshll.u32 %s3, 4
      %s47 = int_to_ptr.hbm [resolvable:$true] %s46
      %s48 = sshll.u32 [#allocation7], 4
      %s49 = int_to_ptr.vmem [resolvable:$true] %s48
      %54 = dma.hbm_to_vmem [thread:$0]  %s47, 2048, %s49, [#allocation6], 128, 128, 8
    $region17: #{tpu_custom_call.1} parent=1 // pred_fallthru
      _
    // Predicated region
    $region18: #{tpu_custom_call.1} parent=1 // pred_check
      _
    $region19: #{tpu_custom_call.1} parent=1 // pred_check_branch
      %56 = sbr.rel (0) target = $region21
    $region20: #{tpu_custom_call.1} parent=1 // pred_region
      _
    $region21: #{tpu_custom_call.1} parent=1 // pred_fallthru
      _
    // Predicated region
    $region22: #{tpu_custom_call.1} parent=1 // pred_check
      _
    $region23: #{tpu_custom_call.1} parent=1 // pred_check_branch
      %58 = sbr.rel (0) target = $region25
    $region24: #{tpu_custom_call.1} parent=1 // pred_region
      %60 = vsyncadd [#allocation9], 0
      %s61 = sshll.u32 %s5, 4
      %s62 = int_to_ptr.hbm [resolvable:$true] %s61
      %s63 = sshll.u32 [#allocation8], 4
      %s64 = int_to_ptr.vmem [resolvable:$true] %s63
      %69 = dma.hbm_to_vmem [thread:$0]  %s62, 2048, %s64, [#allocation9], 64, 64, 4
    $region25: #{tpu_custom_call.1} parent=1 // pred_fallthru
      _
    // Predicated region
    $region26: #{tpu_custom_call.1} parent=1 // pred_check
      _
    $region27: #{tpu_custom_call.1} parent=1 // pred_check_branch
      %71 = sbr.rel (0) target = $region29
    $region28: #{tpu_custom_call.1} parent=1 // pred_region
      _
    $region29: #{tpu_custom_call.1} parent=1 // pred_fallthru
      _
    // Predicated region
    $region30: #{tpu_custom_call.1} parent=1 // pred_check
      _
    $region31: #{tpu_custom_call.1} parent=1 // pred_check_branch
      %73 = sbr.rel (0) target = $region33
    $region32: #{tpu_custom_call.1} parent=1 // pred_region
      %75 = dma.done [#allocation3], 64
    $region33: #{tpu_custom_call.1} parent=1 // pred_fallthru
      _
    // Predicated region
    $region34: #{tpu_custom_call.1} parent=1 // pred_check
      _
    $region35: #{tpu_custom_call.1} parent=1 // pred_check_branch
      %77 = sbr.rel (0) target = $region37
    $region36: #{tpu_custom_call.1} parent=1 // pred_region
      %79 = dma.done [#allocation6], 128
    $region37: #{tpu_custom_call.1} parent=1 // pred_fallthru
      _
    // Predicated region
    $region38: #{tpu_custom_call.1} parent=1 // pred_check
      _
    $region39: #{tpu_custom_call.1} parent=1 // pred_check_branch
      %81 = sbr.rel (0) target = $region41
    $region40: #{tpu_custom_call.1} parent=1 // pred_region
      %83 = dma.done [#allocation6], 2048
    $region41: #{tpu_custom_call.1} parent=1 // pred_fallthru
      _
    // Predicated region
    $region42: #{tpu_custom_call.1} parent=1 // pred_check
      _
    $region43: #{tpu_custom_call.1} parent=1 // pred_check_branch
      %85 = sbr.rel (0) target = $region45
    $region44: #{tpu_custom_call.1} parent=1 // pred_region
      %87 = dma.done [#allocation9], 2048
    $region45: #{tpu_custom_call.1} parent=1 // pred_fallthru
      _
    %v89 = vld [vmem:[#allocation2] sm:$0xf]
    %v90 = vld [vmem:[#allocation5] sm:$0xf]
    %v91 = vld [vmem:[#allocation5 + $0x4] sm:$0xf]
    %v92 = vld [vmem:[%s2] sm:$0x1]
    %v94 = vperm.slane %v92, 0
    %v98 = vunpack.c.l.b16 %v90
    %v99 = vunpack.c.l.b16 %v91
    %v100 = vpack.c.b16 %v99, %v98
    %vm102 = vcmask 130048
    %v104 = vsel %vm102, %v89, 0
    %106 = vmatpush.bf16.msra.mxu0 0
    %107 = vmatpush.bf16.msra.mxu0 0
    %108 = vmatpush.bf16.msra.mxu0 0
    %109 = vmatpush.bf16.msra.mxu0 0
    %110 = vmatpush.bf16.msra.mxu0 0
    %111 = vmatpush.bf16.msra.mxu0 0
    %112 = vmatpush.bf16.msra.mxu0 0
    %113 = vmatpush.bf16.msra.mxu0 %v100
    %114 = vmatmul.bf16.gmra.mxu0 %v104
    %v115 = vpop.f32.mrf.mxu0
    %v116 = vadd.f32 %v94, %v115
    %v117 = vpop.f32.mrf.mxu0
    %118 = vdwg.mxu0
    %v119 = vmax.f32 %v116, 0.0
    %v120 = vpack.c.bf16 %v119, %v119
    %v121 = vld [vmem:[#allocation7] sm:$0xff]
    %v122 = vld [vmem:[#allocation7 + $0x8] sm:$0xff]
    %v123 = vld [vmem:[#allocation7 + $0x10] sm:$0xff]
    %v124 = vld [vmem:[#allocation7 + $0x18] sm:$0xff]
    %v125 = vld [vmem:[#allocation7 + $0x20] sm:$0xff]
    %v126 = vld [vmem:[#allocation7 + $0x28] sm:$0xff]
    %v127 = vld [vmem:[#allocation7 + $0x30] sm:$0xff]
    %v128 = vld [vmem:[#allocation7 + $0x38] sm:$0xff]
    %v129 = vld [vmem:[#allocation7 + $0x40] sm:$0xff]
    %v130 = vld [vmem:[#allocation7 + $0x48] sm:$0xff]
    %v131 = vld [vmem:[#allocation7 + $0x50] sm:$0xff]
    %v132 = vld [vmem:[#allocation7 + $0x58] sm:$0xff]
    %v133 = vld [vmem:[#allocation7 + $0x60] sm:$0xff]
    %v134 = vld [vmem:[#allocation7 + $0x68] sm:$0xff]
    %v135 = vld [vmem:[#allocation7 + $0x70] sm:$0xff]
    %v136 = vld [vmem:[#allocation7 + $0x78] sm:$0xff]
    %v137 = vld [vmem:[%s4] sm:$0x3]
    %v139 = vperm.slane %v137, 0
    %v140 = vperm.slane %v137, 1
    %v159 = vunpack.c.l.b16 %v121
    %v160 = vunpack.c.h.b16 %v121
    %v161 = vunpack.c.l.b16 %v122
    %v162 = vunpack.c.h.b16 %v122
    %v163 = vunpack.c.l.b16 %v123
    %v164 = vunpack.c.h.b16 %v123
    %v165 = vunpack.c.l.b16 %v124
    %v166 = vunpack.c.h.b16 %v124
    %v167 = vunpack.c.l.b16 %v125
    %v168 = vunpack.c.h.b16 %v125
    %v169 = vunpack.c.l.b16 %v126
    %v170 = vunpack.c.h.b16 %v126
    %v171 = vunpack.c.l.b16 %v127
    %v172 = vunpack.c.h.b16 %v127
    %v173 = vunpack.c.l.b16 %v128
    %v174 = vunpack.c.h.b16 %v128
    %v175 = vunpack.c.l.b16 %v129
    %v176 = vunpack.c.h.b16 %v129
    %v177 = vunpack.c.l.b16 %v130
    %v178 = vunpack.c.h.b16 %v130
    %v179 = vunpack.c.l.b16 %v131
    %v180 = vunpack.c.h.b16 %v131
    %v181 = vunpack.c.l.b16 %v132
    %v182 = vunpack.c.h.b16 %v132
    %v183 = vunpack.c.l.b16 %v133
    %v184 = vunpack.c.h.b16 %v133
    %v185 = vunpack.c.l.b16 %v134
    %v186 = vunpack.c.h.b16 %v134
    %v187 = vunpack.c.l.b16 %v135
    %v188 = vunpack.c.h.b16 %v135
    %v189 = vunpack.c.l.b16 %v136
    %v190 = vunpack.c.h.b16 %v136
    %v191 = vpack.c.b16 %v161, %v159
    %v192 = vpack.c.b16 %v162, %v160
    %v193 = vpack.c.b16 %v165, %v163
    %v194 = vpack.c.b16 %v166, %v164
    %v195 = vpack.c.b16 %v169, %v167
    %v196 = vpack.c.b16 %v170, %v168
    %v197 = vpack.c.b16 %v173, %v171
    %v198 = vpack.c.b16 %v174, %v172
    %v199 = vpack.c.b16 %v177, %v175
    %v200 = vpack.c.b16 %v178, %v176
    %v201 = vpack.c.b16 %v181, %v179
    %v202 = vpack.c.b16 %v182, %v180
    %v203 = vpack.c.b16 %v185, %v183
    %v204 = vpack.c.b16 %v186, %v184
    %v205 = vpack.c.b16 %v189, %v187
    %v206 = vpack.c.b16 %v190, %v188
    %223 = vmatpush.bf16.msra.mxu0 %v205
    %224 = vmatpush.bf16.msra.mxu0 %v203
    %225 = vmatpush.bf16.msra.mxu0 %v201
    %226 = vmatpush.bf16.msra.mxu0 %v199
    %227 = vmatpush.bf16.msra.mxu0 %v197
    %228 = vmatpush.bf16.msra.mxu0 %v195
    %229 = vmatpush.bf16.msra.mxu0 %v193
    %230 = vmatpush.bf16.msra.mxu0 %v191
    %231 = vmatmul.bf16.gmra.mxu0 %v120
    %v232 = vpop.f32.mrf.mxu0
    %v233 = vadd.f32 %v139, %v232
    %v234 = vpop.f32.mrf.mxu0
    %235 = vdwg.mxu0
    %236 = vmatpush.bf16.msra.mxu0 %v206
    %237 = vmatpush.bf16.msra.mxu0 %v204
    %238 = vmatpush.bf16.msra.mxu0 %v202
    %239 = vmatpush.bf16.msra.mxu0 %v200
    %240 = vmatpush.bf16.msra.mxu0 %v198
    %241 = vmatpush.bf16.msra.mxu0 %v196
    %242 = vmatpush.bf16.msra.mxu0 %v194
    %243 = vmatpush.bf16.msra.mxu0 %v192
    %244 = vmatmul.bf16.gmra.mxu0 %v120
    %v245 = vpop.f32.mrf.mxu0
    %v246 = vadd.f32 %v140, %v245
    %v247 = vpop.f32.mrf.mxu0
    %248 = vdwg.mxu0
    %v249 = vmax.f32 %v233, 0.0
    %v250 = vmax.f32 %v246, 0.0
    %v251 = vpack.c.bf16 %v249, %v249
    %v252 = vpack.c.bf16 %v250, %v250
    %v253 = vld [vmem:[#allocation8] sm:$0xf]
    %v254 = vld [vmem:[#allocation8 + $0x4] sm:$0xf]
    %v255 = vld [vmem:[#allocation8 + $0x8] sm:$0xf]
    %v256 = vld [vmem:[#allocation8 + $0xc] sm:$0xf]
    %v257 = vld [vmem:[#allocation8 + $0x10] sm:$0xf]
    %v258 = vld [vmem:[#allocation8 + $0x14] sm:$0xf]
    %v259 = vld [vmem:[#allocation8 + $0x18] sm:$0xf]
    %v260 = vld [vmem:[#allocation8 + $0x1c] sm:$0xf]
    %v261 = vld [vmem:[#allocation8 + $0x20] sm:$0xf]
    %v262 = vld [vmem:[#allocation8 + $0x24] sm:$0xf]
    %v263 = vld [vmem:[#allocation8 + $0x28] sm:$0xf]
    %v264 = vld [vmem:[#allocation8 + $0x2c] sm:$0xf]
    %v265 = vld [vmem:[#allocation8 + $0x30] sm:$0xf]
    %v266 = vld [vmem:[#allocation8 + $0x34] sm:$0xf]
    %v267 = vld [vmem:[#allocation8 + $0x38] sm:$0xf]
    %v268 = vld [vmem:[#allocation8 + $0x3c] sm:$0xf]
    %v269 = vld [vmem:[#allocation8 + $0x40] sm:$0xf]
    %v270 = vld [vmem:[#allocation8 + $0x44] sm:$0xf]
    %v271 = vld [vmem:[#allocation8 + $0x48] sm:$0xf]
    %v272 = vld [vmem:[#allocation8 + $0x4c] sm:$0xf]
    %v273 = vld [vmem:[#allocation8 + $0x50] sm:$0xf]
    %v274 = vld [vmem:[#allocation8 + $0x54] sm:$0xf]
    %v275 = vld [vmem:[#allocation8 + $0x58] sm:$0xf]
    %v276 = vld [vmem:[#allocation8 + $0x5c] sm:$0xf]
    %v277 = vld [vmem:[#allocation8 + $0x60] sm:$0xf]
    %v278 = vld [vmem:[#allocation8 + $0x64] sm:$0xf]
    %v279 = vld [vmem:[#allocation8 + $0x68] sm:$0xf]
    %v280 = vld [vmem:[#allocation8 + $0x6c] sm:$0xf]
    %v281 = vld [vmem:[#allocation8 + $0x70] sm:$0xf]
    %v282 = vld [vmem:[#allocation8 + $0x74] sm:$0xf]
    %v283 = vld [vmem:[#allocation8 + $0x78] sm:$0xf]
    %v284 = vld [vmem:[#allocation8 + $0x7c] sm:$0xf]
    %v285 = vld [vmem:[%s6] sm:$0x1]
    %v287 = vperm.slane %v285, 0
    %v321 = vunpack.c.l.b16 %v253
    %v322 = vunpack.c.l.b16 %v254
    %v323 = vunpack.c.l.b16 %v255
    %v324 = vunpack.c.l.b16 %v256
    %v325 = vunpack.c.l.b16 %v257
    %v326 = vunpack.c.l.b16 %v258
    %v327 = vunpack.c.l.b16 %v259
    %v328 = vunpack.c.l.b16 %v260
    %v329 = vunpack.c.l.b16 %v261
    %v330 = vunpack.c.l.b16 %v262
    %v331 = vunpack.c.l.b16 %v263
    %v332 = vunpack.c.l.b16 %v264
    %v333 = vunpack.c.l.b16 %v265
    %v334 = vunpack.c.l.b16 %v266
    %v335 = vunpack.c.l.b16 %v267
    %v336 = vunpack.c.l.b16 %v268
    %v337 = vunpack.c.l.b16 %v269
    %v338 = vunpack.c.l.b16 %v270
    %v339 = vunpack.c.l.b16 %v271
    %v340 = vunpack.c.l.b16 %v272
    %v341 = vunpack.c.l.b16 %v273
    %v342 = vunpack.c.l.b16 %v274
    %v343 = vunpack.c.l.b16 %v275
    %v344 = vunpack.c.l.b16 %v276
    %v345 = vunpack.c.l.b16 %v277
    %v346 = vunpack.c.l.b16 %v278
    %v347 = vunpack.c.l.b16 %v279
    %v348 = vunpack.c.l.b16 %v280
    %v349 = vunpack.c.l.b16 %v281
    %v350 = vunpack.c.l.b16 %v282
    %v351 = vunpack.c.l.b16 %v283
    %v352 = vunpack.c.l.b16 %v284
    %v353 = vpack.c.b16 %v322, %v321
    %v354 = vpack.c.b16 %v324, %v323
    %v355 = vpack.c.b16 %v326, %v325
    %v356 = vpack.c.b16 %v328, %v327
    %v357 = vpack.c.b16 %v330, %v329
    %v358 = vpack.c.b16 %v332, %v331
    %v359 = vpack.c.b16 %v334, %v333
    %v360 = vpack.c.b16 %v336, %v335
    %v361 = vpack.c.b16 %v338, %v337
    %v362 = vpack.c.b16 %v340, %v339
    %v363 = vpack.c.b16 %v342, %v341
    %v364 = vpack.c.b16 %v344, %v343
    %v365 = vpack.c.b16 %v346, %v345
    %v366 = vpack.c.b16 %v348, %v347
    %v367 = vpack.c.b16 %v350, %v349
    %v368 = vpack.c.b16 %v352, %v351
    %385 = vmatpush.bf16.msra.mxu0 %v360
    %386 = vmatpush.bf16.msra.mxu0 %v359
    %387 = vmatpush.bf16.msra.mxu0 %v358
    %388 = vmatpush.bf16.msra.mxu0 %v357
    %389 = vmatpush.bf16.msra.mxu0 %v356
    %390 = vmatpush.bf16.msra.mxu0 %v355
    %391 = vmatpush.bf16.msra.mxu0 %v354
    %392 = vmatpush.bf16.msra.mxu0 %v353
    %393 = vmatmul.bf16.gmra.mxu0 %v251
    %v394 = vpop.f32.mrf.mxu0
    %v395 = vadd.f32 %v287, %v394
    %v396 = vpop.f32.mrf.mxu0
    %397 = vdwg.mxu0
    %398 = vmatpush.bf16.msra.mxu0 %v368
    %399 = vmatpush.bf16.msra.mxu0 %v367
    %400 = vmatpush.bf16.msra.mxu0 %v366
    %401 = vmatpush.bf16.msra.mxu0 %v365
    %402 = vmatpush.bf16.msra.mxu0 %v364
    %403 = vmatpush.bf16.msra.mxu0 %v363
    %404 = vmatpush.bf16.msra.mxu0 %v362
    %405 = vmatpush.bf16.msra.mxu0 %v361
    %406 = vmatmul.bf16.gmra.mxu0 %v252
    %v407 = vpop.f32.mrf.mxu0
    %v408 = vadd.f32 %v395, %v407
    %v409 = vpop.f32.mrf.mxu0
    %410 = vdwg.mxu0
    %v411 = vtanh.pop %v408
    %v412 = vmul.f32 %v411, 2.0
    %413 = vst [vmem:[#allocation10] sm:$0xff] %v412
    // Predicated region
    $region46: #{tpu_custom_call.1} parent=1 // pred_check
      _
    $region47: #{tpu_custom_call.1} parent=1 // pred_check_branch
      %415 = sbr.rel (0) target = $region49
    $region48: #{tpu_custom_call.1} parent=1 // pred_region
      %417 = vsyncadd [#allocation4], 0
      %s419 = sshll.u32 [#allocation10], 4
      %s420 = int_to_ptr.vmem [resolvable:$true] %s419
      %s421 = sshll.u32 %s7, 4
      %s422 = int_to_ptr.hbm [resolvable:$true] %s421
      %424 = dma.vmem_to_hbm [thread:$0]  %s420, 128, %s422, [#allocation4]
    $region49: #{tpu_custom_call.1} parent=1 // pred_fallthru
      _
    // Predicated region
    $region50: #{tpu_custom_call.1} parent=1 // pred_check
      _
    $region51: #{tpu_custom_call.1} parent=1 // pred_check_branch
      %426 = sbr.rel (0) target = $region53
    $region52: #{tpu_custom_call.1} parent=1 // pred_region
      %428 = dma.done [#allocation4], 128
    $region53: #{tpu_custom_call.1} parent=1 // pred_fallthru
      _
    %429 = vsyncpa [#allocation3], 1
    %430 = vsyncpa [#allocation6], 1
    %431 = vsyncpa [#allocation9], 1
    %432 = vsyncpa [#allocation4], 1

</llo_original>
